<compile_context>
chip_gen: v7x
topology: tpu7x:2x2x1
jax: 0.10.0
libtpu: 0.0.40
codegen_flags: <defaults>
</compile_context>

<pallas_src>
import jax
import jax.numpy as jnp
import numpy as np
from jax.experimental import pallas as pl
from jax.experimental.pallas import tpu as pltpu


# ----------------------------------------------------------------------------- kernels

def mri_head_kernel_1d(feats_ref, w_ref, b_ref, out_ref):
    """1-D grid over batch tiles only; the whole spatial extent is resident.

    feats_ref: (TB, HW, C)  NHWC feature map chunk (channels on the lane axis)
    w_ref:     (C, NPAD)    fc weight^T with 1/(H*W) folded in, zero-padded to 128 lanes
    b_ref:     (1, NPAD)    fc bias, padded columns set to -1e30 (exp -> 0 in softmax)
    out_ref:   (TB, NPAD)   softmax(fc(mean_pool(features)))   (lane-dense store)
    """
    # f32 accumulation during the reduce; no materialized f32 copy of the tile.
    pooled = jnp.sum(feats_ref[...], axis=1, dtype=jnp.float32)          # (TB, C)
    logits = jnp.dot(pooled, w_ref[...],
                     preferred_element_type=jnp.float32) + b_ref[...]
    # nn.Softmax() on a 2-D tensor defaults to dim=1 (the last dim here).
    m = jnp.max(logits, axis=-1, keepdims=True)
    e = jnp.exp(logits - m)                                              # EUP
    denom = jnp.sum(e, axis=-1, keepdims=True)
    inv = pl.reciprocal(denom, approx=True)                              # EUP slot
    inv = inv * (2.0 - denom * inv)                                      # Newton step
    out_ref[...] = (e * inv).astype(out_ref.dtype)


def mri_head_kernel_2d(feats_ref, w_ref, b_ref, out_ref, acc_ref):
    """2-D grid (batch_tiles, hw_tiles); hw is the (innermost) reduction axis.

    acc_ref: (TB, C) f32 running spatial sum (VMEM scratch, persists over hw axis).
    """
    step = pl.program_id(1)

    @pl.when(step == 0)
    def _init():
        acc_ref[...] = jnp.zeros_like(acc_ref)

    # Partial spatial sum for this HW chunk; 1/(H*W) is folded into w_ref.
    acc_ref[...] += jnp.sum(feats_ref[...], axis=1, dtype=jnp.float32)

    @pl.when(step == pl.num_programs(1) - 1)
    def _finalize():
        logits = jnp.dot(acc_ref[...], w_ref[...],
                         preferred_element_type=jnp.float32) + b_ref[...]
        m = jnp.max(logits, axis=-1, keepdims=True)
        e = jnp.exp(logits - m)
        denom = jnp.sum(e, axis=-1, keepdims=True)
        inv = pl.reciprocal(denom, approx=True)
        inv = inv * (2.0 - denom * inv)
        out_ref[...] = (e * inv).astype(out_ref.dtype)


# ----------------------------------------------------------------------------- planning

def _vmem_budget():
    """(per-feature-buffer byte budget, vmem_limit cap) per TPU generation."""
    try:
        vmem_bytes = int(pltpu.get_tpu_info().vmem_capacity_bytes)
    except Exception:
        vmem_bytes = 64 * 1024 * 1024           # assume the tightest (v7x-like)
    if vmem_bytes >= 100 * 1024 * 1024:         # v5e / v6e: 128 MiB physical
        return 8 * 1024 * 1024, 64 * 1024 * 1024
    return 6 * 1024 * 1024, 40 * 1024 * 1024    # v7x: 64 MiB physical per TensorCore


def _choose_batch_tile(bs, cap=32):
    """Batch tile: multiple of 8 when possible; >= 2 batch tiles when bs allows it
    so the 'parallel' batch axis can shard across both TensorCores on v7x."""
    if bs % 8 != 0:
        return bs                     # whole batch (block dim == full dim is always legal)
    if bs >= 16:
        cap = min(cap, bs // 2)       # guarantee at least two batch tiles
    tb = 8
    for cand in (16, 32):
        if cand <= cap and bs % cand == 0:
            tb = cand
    return tb


def _largest_hw_divisor(hw, per_row_bytes, budget_bytes):
    """Largest multiple-of-8 divisor of hw whose tile fits the budget (None if none)."""
    best = None
    for d in range(8, hw, 8):
        if hw % d == 0 and d * per_row_bytes <= budget_bytes:
            best = d
    return best


def _plan_tiles(bs, hw, c, elem_bytes, budget_bytes, block_bs=None, block_hw=None):
    """Pick (tb, thw). Prefer thw == hw (1-D batch-only grid, contiguous DMA);
    introduce the HW reduction axis only when a full tile would blow the budget."""
    tb = block_bs if block_bs is not None else _choose_batch_tile(bs)
    assert bs % tb == 0, "batch tile must divide bs"

    if block_hw is not None:
        thw = block_hw
    elif tb * hw * c * elem_bytes <= budget_bytes:
        thw = hw
    else:
        thw = _largest_hw_divisor(hw, tb * c * elem_bytes, budget_bytes)
        # No legal HW split: fall back to smaller batch tiles before giving up.
        while thw is None and tb % 16 == 0:
            tb //= 2
            if tb * hw * c * elem_bytes <= budget_bytes:
                thw = hw
            else:
                thw = _largest_hw_divisor(hw, tb * c * elem_bytes, budget_bytes)
        if thw is None:
            thw = hw                  # accept over-budget full-extent tile (still correct)

    assert hw % thw == 0, "hw tile must divide H*W"
    assert thw == hw or thw % 8 == 0, "hw tile must be a multiple of 8 or the full extent"
    return tb, thw


# ----------------------------------------------------------------------------- wrapper

def mri_model_head(features_nhwc, fc_weight, fc_bias, *, block_bs=None, block_hw=None):
    """features_nhwc: (bs, H, W, C) backbone output, channels last (native JAX conv
    layout, no transpose pass over the largest tensor); bf16 recommended.
    fc_weight: (out_dim, C) as in nn.Linear; fc_bias: (out_dim,)."""
    bs, h, w, c = features_nhwc.shape
    hw = h * w
    out_dim = fc_weight.shape[0]
    n_pad = ((out_dim + 127) // 128) * 128

    feats = features_nhwc.reshape(bs, hw, c)   # channels already on the lane axis

    # Fold the 1/(H*W) mean into the fc weight and pad N to a full 128-lane tile.
    # Padded weight columns are zero; padded bias entries are -1e30 so exp() -> 0
    # and they do not perturb the softmax over the real out_dim columns.
    w_scaled = jnp.asarray(fc_weight, jnp.float32).T / float(hw)          # (C, out_dim)
    w_pad = jnp.zeros((c, n_pad), jnp.float32).at[:, :out_dim].set(w_scaled)
    b_pad = jnp.full((1, n_pad), -1e30, jnp.float32).at[0, :out_dim].set(
        jnp.asarray(fc_bias, jnp.float32))

    elem_bytes = jnp.dtype(feats.dtype).itemsize
    budget_bytes, vmem_cap = _vmem_budget()
    tb, thw = _plan_tiles(bs, hw, c, elem_bytes, budget_bytes, block_bs, block_hw)

    # Planned VMEM: double-buffered feature tiles + (conservatively double-buffered)
    # weight/bias/output blocks + the f32 accumulator. Only raise the scoped limit
    # above the 32 MiB default when the plan actually needs it (never above the cap).
    feat_tile_bytes = tb * thw * c * elem_bytes
    planned = (2 * feat_tile_bytes + 2 * (c + 1) * n_pad * 4
               + tb * c * 4 + 2 * tb * n_pad * 4)
    vmem_limit = min(vmem_cap, max(32 * 1024 * 1024, planned + 8 * 1024 * 1024))

    # One HBM pass over the feature map dominates; tell XLA so it can schedule/overlap.
    cost = pl.CostEstimate(
        flops=int(bs * hw * c + 2 * bs * c * n_pad),
        transcendentals=int(bs * (n_pad + 1)),
        bytes_accessed=int(bs * hw * c * elem_bytes
                           + (c + 1) * n_pad * 4 + bs * n_pad * 4),
    )

    if thw == hw:
        # ------- 1-D batch-only grid: contiguous DMA, no accumulator phases -------
        grid = (bs // tb,)
        out_padded = pl.pallas_call(
            mri_head_kernel_1d,
            out_shape=jax.ShapeDtypeStruct((bs, n_pad), jnp.float32),
            grid_spec=pltpu.PrefetchScalarGridSpec(
                num_scalar_prefetch=0,
                grid=grid,
                in_specs=[
                    pl.BlockSpec((tb, hw, c), lambda b: (b, 0, 0)),
                    # Grid-invariant weight/bias: single pipeline buffer is enough.
                    pl.BlockSpec((c, n_pad), lambda b: (0, 0),
                                 pipeline_mode=pl.Buffered(1)),
                    pl.BlockSpec((1, n_pad), lambda b: (0, 0),
                                 pipeline_mode=pl.Buffered(1)),
                ],
                out_specs=pl.BlockSpec((tb, n_pad), lambda b: (b, 0)),
            ),
            compiler_params=pltpu.CompilerParams(
                dimension_semantics=("parallel",),
                vmem_limit_bytes=vmem_limit,
            ),
            cost_estimate=cost,
        )(feats, w_pad, b_pad)
    else:
        # ------- 2-D grid: batch axis parallel, HW reduction axis last -------
        grid = (bs // tb, hw // thw)
        out_padded = pl.pallas_call(
            mri_head_kernel_2d,
            out_shape=jax.ShapeDtypeStruct((bs, n_pad), jnp.float32),
            grid_spec=pltpu.PrefetchScalarGridSpec(
                num_scalar_prefetch=0,
                grid=grid,
                in_specs=[
                    pl.BlockSpec((tb, thw, c), lambda b, s: (b, s, 0)),
                    pl.BlockSpec((c, n_pad), lambda b, s: (0, 0),
                                 pipeline_mode=pl.Buffered(1)),
                    pl.BlockSpec((1, n_pad), lambda b, s: (0, 0),
                                 pipeline_mode=pl.Buffered(1)),
                ],
                out_specs=pl.BlockSpec((tb, n_pad), lambda b, s: (b, 0)),   # resident over HW
                scratch_shapes=[pltpu.VMEM((tb, c), jnp.float32)],          # partial sum
            ),
            compiler_params=pltpu.CompilerParams(
                dimension_semantics=("parallel", "arbitrary"),
                vmem_limit_bytes=vmem_limit,
            ),
            cost_estimate=cost,
        )(feats, w_pad, b_pad)

    return out_padded[:, :out_dim]


# ----------------------------------------------------------------------------- reference

def _reference(features_nhwc, fc_weight, fc_bias):
    feats32 = features_nhwc.astype(jnp.float32)
    pooled = jnp.mean(feats32, axis=(1, 2))                              # AdaptiveAvgPool2d(1)
    logits = pooled @ jnp.asarray(fc_weight, jnp.float32).T + jnp.asarray(fc_bias, jnp.float32)
    return jax.nn.softmax(logits, axis=1)


if __name__ == "__main__":
    # Small shapes consistent with the module's head:
    # bs=2 images -> backbone feature map (bs, 8, 8, n_features) NHWC; out_dim=4.
    bs, n_features, h, w, out_dim = 2, 256, 8, 8, 4

    key = jax.random.PRNGKey(0)
    k_feat, k_w, k_b = jax.random.split(key, 3)

    # Stand-in for self.model(x) output (resnet50d would give n_features=2048),
    # fed in bf16 to halve HBM bytes for the dominant tensor.
    features = jax.random.normal(
        k_feat, (bs, h, w, n_features), dtype=jnp.float32).astype(jnp.bfloat16)

    # Deterministic nn.Linear(n_features, out_dim) init: U(-1/sqrt(fan_in), 1/sqrt(fan_in))
    bound = 1.0 / np.sqrt(n_features)
    fc_weight = jax.random.uniform(k_w, (out_dim, n_features), jnp.float32, -bound, bound)
    fc_bias = jax.random.uniform(k_b, (out_dim,), jnp.float32, -bound, bound)

    ref = _reference(features, fc_weight, fc_bias)

    # Default plan: the full spatial extent fits the budget -> 1-D batch-only grid.
    out = jax.block_until_ready(mri_model_head(features, fc_weight, fc_bias))
    np.testing.assert_allclose(np.asarray(out), np.asarray(ref), rtol=2e-3, atol=2e-3)
    np.testing.assert_allclose(np.asarray(out).sum(axis=1), np.ones(bs), rtol=1e-3, atol=1e-3)
    assert out.shape == (bs, out_dim)

    # Forced 4-step HW reduction: exercises the 2-D accumulator (init/acc/finalize) path.
    out2 = jax.block_until_ready(
        mri_model_head(features, fc_weight, fc_bias, block_hw=16))
    np.testing.assert_allclose(np.asarray(out2), np.asarray(ref), rtol=2e-3, atol=2e-3)

    print("KERNEL_OK")
</pallas_src>

<mosaic_0001>
module attributes {stable_mosaic.version = 11 : i64} {
  func.func @mri_head_kernel_1d(%arg0: i32, %arg1: memref<2x64x256xbf16, #tpu.memory_space<vmem>>, %arg2: memref<256x128xf32, #tpu.memory_space<vmem>>, %arg3: memref<1x128xf32, #tpu.memory_space<vmem>>, %arg4: memref<2x128xf32, #tpu.memory_space<vmem>>) attributes {dimension_semantics = [#tpu.dimension_semantics<parallel>], iteration_bounds = array<i64: 1>, scalar_prefetch = 0 : i64, scratch_operands = 0 : i64, tpu.core_type = #tpu.core_type<tc>, window_params = [{transform_indices = @transform_0, window_bounds = array<i64: 2, 64, 256>}, {pipeline_mode = #tpu.pipeline_mode<synchronous>, transform_indices = @transform_1, window_bounds = array<i64: 256, 128>}, {pipeline_mode = #tpu.pipeline_mode<synchronous>, transform_indices = @transform_2, window_bounds = array<i64: 1, 128>}, {transform_indices = @transform_3, window_bounds = array<i64: 2, 128>}]} {
    %c0 = arith.constant 0 : index
    %c0_0 = arith.constant 0 : index
    %c0_1 = arith.constant 0 : index
    %0 = vector.load %arg1[%c0, %c0_0, %c0_1] : memref<2x64x256xbf16, #tpu.memory_space<vmem>>, vector<2x64x256xbf16>
    %1 = arith.extf %0 : vector<2x64x256xbf16> to vector<2x64x256xf32>
    %cst = arith.constant dense<0.000000e+00> : vector<2x256xf32>
    %2 = vector.multi_reduction <add>, %1, %cst [1] : vector<2x64x256xf32> to vector<2x256xf32>
    %c0_2 = arith.constant 0 : index
    %c0_3 = arith.constant 0 : index
    %3 = vector.load %arg2[%c0_2, %c0_3] : memref<256x128xf32, #tpu.memory_space<vmem>>, vector<256x128xf32>
    %cst_4 = arith.constant dense<0.000000e+00> : vector<2x128xf32>
    %4 = tpu.matmul %2, %3, %cst_4 {dimension_numbers = #tpu.dot_dimension_numbers<[1], [0], [0], [1], [0, 0, 1, 1], [], []>} : vector<2x256xf32>, vector<256x128xf32>, vector<2x128xf32> -> vector<2x128xf32>
    %c0_5 = arith.constant 0 : index
    %c0_6 = arith.constant 0 : index
    %5 = vector.load %arg3[%c0_5, %c0_6] : memref<1x128xf32, #tpu.memory_space<vmem>>, vector<1x128xf32>
    %6 = vector.broadcast %5 : vector<1x128xf32> to vector<2x128xf32>
    %7 = arith.addf %4, %6 : vector<2x128xf32>
    %cst_7 = arith.constant dense<0xFF800000> : vector<2xf32>
    %8 = vector.multi_reduction <maximumf>, %7, %cst_7 [1] : vector<2x128xf32> to vector<2xf32>
    %9 = vector.shape_cast %8 : vector<2xf32> to vector<2x1xf32>
    %10 = vector.broadcast %9 : vector<2x1xf32> to vector<2x128xf32>
    %11 = arith.subf %7, %10 : vector<2x128xf32>
    %12 = math.exp %11 : vector<2x128xf32>
    %cst_8 = arith.constant dense<0.000000e+00> : vector<2xf32>
    %13 = vector.multi_reduction <add>, %12, %cst_8 [1] : vector<2x128xf32> to vector<2xf32>
    %14 = vector.shape_cast %13 : vector<2xf32> to vector<2x1xf32>
    %15 = tpu.reciprocal %14 {approx = true} : vector<2x1xf32> -> vector<2x1xf32>
    %16 = arith.mulf %14, %15 : vector<2x1xf32>
    %cst_9 = arith.constant 2.000000e+00 : f32
    %17 = vector.broadcast %cst_9 : f32 to vector<2x1xf32>
    %18 = arith.subf %17, %16 : vector<2x1xf32>
    %19 = arith.mulf %15, %18 : vector<2x1xf32>
    %20 = vector.broadcast %19 : vector<2x1xf32> to vector<2x128xf32>
    %21 = arith.mulf %12, %20 : vector<2x128xf32>
    %c0_10 = arith.constant 0 : index
    %c0_11 = arith.constant 0 : index
    %22 = vector.load %arg4[%c0_10, %c0_11] : memref<2x128xf32, #tpu.memory_space<vmem>>, vector<2x128xf32>
    tpu.vector_store %arg4[%c0_10, %c0_11], %21 {strides = array<i32>} : memref<2x128xf32, #tpu.memory_space<vmem>>, vector<2x128xf32>,
    return
  }
  func.func @transform_0(%arg0: i32) -> (i32, i32, i32) {
    %c0_i32 = arith.constant 0 : i32
    %c0_i32_0 = arith.constant 0 : i32
    %c0_i32_1 = arith.constant 0 : i32
    return %arg0, %c0_i32, %c0_i32_0 : i32, i32, i32
  }
  func.func @transform_1(%arg0: i32) -> (i32, i32) {
    %c0_i32 = arith.constant 0 : i32
    %c0_i32_0 = arith.constant 0 : i32
    %c0_i32_1 = arith.constant 0 : i32
    return %c0_i32, %c0_i32_0 : i32, i32
  }
  func.func @transform_2(%arg0: i32) -> (i32, i32) {
    %c0_i32 = arith.constant 0 : i32
    %c0_i32_0 = arith.constant 0 : i32
    %c0_i32_1 = arith.constant 0 : i32
    return %c0_i32, %c0_i32_0 : i32, i32
  }
  func.func @transform_3(%arg0: i32) -> (i32, i32) {
    %c0_i32 = arith.constant 0 : i32
    %c0_i32_0 = arith.constant 0 : i32
    return %arg0, %c0_i32 : i32, i32
  }
}

</mosaic_0001>

<llo_original>
// kernel: tpu_custom_call.1
$region0: #{tpu_custom_call.1}
  #allocation0 [shape = 'u32[]', space=smem, size = 0x4, offset = 0x4, fixed_abs, tag = 'smem constant byte address 0x4 - core index']
  #allocation1 [shape = 'u32[144,128]{1,0:T(1,128)}', space=vmem, size = 0x12000, scoped, tag = 'internal scratch']
  %s0 = inlined_call_operand.hbm [shape: bf16[2,64,256], index: 0, kind: input, shape index: {}]
  %s1 = inlined_call_operand.hbm [shape: f32[256,128], index: 1, kind: input, shape index: {}]
  %s2 = inlined_call_operand.vmem [shape: f32[1,128], index: 2, kind: input, shape index: {}]
  %s3 = inlined_call_operand.hbm [shape: f32[2,128], index: 3, kind: output, shape index: {}]
  %s4 = sld [smem:[#allocation0]]
  $region30: #{tpu_custom_call.1} parent=0
    _
  %s6 = ssub.s32 1, %s4
  %s7 = scalar_select 0, %s6, %s4
  $region1: #{tpu_custom_call.1} parent=0
    #allocation2 [shape = 'u8[65536]{0}', space=vmem, size = 0x10000, scoped, tag = 'input window, operand 0, single buffered']
    #allocation3 [shape = 's32[1]{0}', space=sflag, size = 0x4, scoped, tag = 'scoped memory for tpu_custom_call.1']
    #allocation4 [shape = 's32[1]{0}', space=sflag, size = 0x4, scoped, tag = 'scoped memory for tpu_custom_call.1']
    #allocation5 [shape = 'u8[131072]{0}', space=vmem, size = 0x20000, scoped, tag = 'input window, operand 1, single buffered']
    #allocation6 [shape = 's32[1]{0}', space=sflag, size = 0x4, scoped, tag = 'scoped memory for tpu_custom_call.1']
    #allocation7 [shape = 'u8[1024]{0}', space=vmem, size = 0x400, scoped, tag = 'output window, operand 0, single buffered']
    %8 = vsyncpa [#allocation3], 0
    %9 = vsyncpa [#allocation6], 0
    %10 = vsyncpa [#allocation4], 0
    // Predicated region
    $region2: #{tpu_custom_call.1} parent=1 // pred_check
      _
    $region3: #{tpu_custom_call.1} parent=1 // pred_check_branch
      %12 = sbr.rel (0) target = $region5
    $region4: #{tpu_custom_call.1} parent=1 // pred_region
      %s14 = ssub.s32 2048, 2048
      %15 = vsyncadd [#allocation3], %s14
      %s16 = sshll.u32 [#allocation2], 4
      %s17 = int_to_ptr.vmem [resolvable:$true] %s16
      %22 = dma.hbm_to_vmem [thread:$0]  %s0, 2048, %s17, [#allocation3], 128, 128, 8
    $region5: #{tpu_custom_call.1} parent=1 // pred_fallthru
      _
    // Predicated region
    $region6: #{tpu_custom_call.1} parent=1 // pred_check
      _
    $region7: #{tpu_custom_call.1} parent=1 // pred_check_branch
      %24 = sbr.rel (0) target = $region9
    $region8: #{tpu_custom_call.1} parent=1 // pred_region
      %s26 = ssub.s32 4096, 4096
      %27 = vsyncadd [#allocation6], %s26
      %s28 = sshll.u32 [#allocation5], 4
      %s29 = int_to_ptr.vmem [resolvable:$true] %s28
      %34 = dma.hbm_to_vmem [thread:$0]  %s1, 4096, %s29, [#allocation6], 128, 128, 8
    $region9: #{tpu_custom_call.1} parent=1 // pred_fallthru
      _
    // Predicated region
    $region10: #{tpu_custom_call.1} parent=1 // pred_check
      _
    $region11: #{tpu_custom_call.1} parent=1 // pred_check_branch
      %36 = sbr.rel (0) target = $region13
    $region12: #{tpu_custom_call.1} parent=1 // pred_region
      _
    $region13: #{tpu_custom_call.1} parent=1 // pred_fallthru
      _
    // Predicated region
    $region14: #{tpu_custom_call.1} parent=1 // pred_check
      _
    $region15: #{tpu_custom_call.1} parent=1 // pred_check_branch
      %38 = sbr.rel (0) target = $region17
    $region16: #{tpu_custom_call.1} parent=1 // pred_region
      %39 = dma.done [#allocation3], 2048
    $region17: #{tpu_custom_call.1} parent=1 // pred_fallthru
      _
    // Predicated region
    $region18: #{tpu_custom_call.1} parent=1 // pred_check
      _
    $region19: #{tpu_custom_call.1} parent=1 // pred_check_branch
      %41 = sbr.rel (0) target = $region21
    $region20: #{tpu_custom_call.1} parent=1 // pred_region
      %42 = dma.done [#allocation6], 4096
    $region21: #{tpu_custom_call.1} parent=1 // pred_fallthru
      _
    %v43 = vld [vmem:[#allocation2] sm:$0xff]
    %v44 = vld [vmem:[#allocation2 + $0x8] sm:$0xff]
    %v45 = vld [vmem:[#allocation2 + $0x10] sm:$0xff]
    %v46 = vld [vmem:[#allocation2 + $0x18] sm:$0xff]
    %v47 = vld [vmem:[#allocation2 + $0x20] sm:$0xff]
    %v48 = vld [vmem:[#allocation2 + $0x28] sm:$0xff]
    %v49 = vld [vmem:[#allocation2 + $0x30] sm:$0xff]
    %v50 = vld [vmem:[#allocation2 + $0x38] sm:$0xff]
    %v51 = vld [vmem:[#allocation2 + $0x40] sm:$0xff]
    %v52 = vld [vmem:[#allocation2 + $0x48] sm:$0xff]
    %v53 = vld [vmem:[#allocation2 + $0x50] sm:$0xff]
    %v54 = vld [vmem:[#allocation2 + $0x58] sm:$0xff]
    %v55 = vld [vmem:[#allocation2 + $0x60] sm:$0xff]
    %v56 = vld [vmem:[#allocation2 + $0x68] sm:$0xff]
    %v57 = vld [vmem:[#allocation2 + $0x70] sm:$0xff]
    %v58 = vld [vmem:[#allocation2 + $0x78] sm:$0xff]
    %v59 = vunpack.c.l.bf16 %v43
    %v60 = vunpack.c.h.bf16 %v43
    %v61 = vunpack.c.l.bf16 %v44
    %v62 = vunpack.c.h.bf16 %v44
    %v63 = vunpack.c.l.bf16 %v45
    %v64 = vunpack.c.h.bf16 %v45
    %v65 = vunpack.c.l.bf16 %v46
    %v66 = vunpack.c.h.bf16 %v46
    %v67 = vunpack.c.l.bf16 %v47
    %v68 = vunpack.c.h.bf16 %v47
    %v69 = vunpack.c.l.bf16 %v48
    %v70 = vunpack.c.h.bf16 %v48
    %v71 = vunpack.c.l.bf16 %v49
    %v72 = vunpack.c.h.bf16 %v49
    %v73 = vunpack.c.l.bf16 %v50
    %v74 = vunpack.c.h.bf16 %v50
    %v75 = vunpack.c.l.bf16 %v51
    %v76 = vunpack.c.h.bf16 %v51
    %v77 = vunpack.c.l.bf16 %v52
    %v78 = vunpack.c.h.bf16 %v52
    %v79 = vunpack.c.l.bf16 %v53
    %v80 = vunpack.c.h.bf16 %v53
    %v81 = vunpack.c.l.bf16 %v54
    %v82 = vunpack.c.h.bf16 %v54
    %v83 = vunpack.c.l.bf16 %v55
    %v84 = vunpack.c.h.bf16 %v55
    %v85 = vunpack.c.l.bf16 %v56
    %v86 = vunpack.c.h.bf16 %v56
    %v87 = vunpack.c.l.bf16 %v57
    %v88 = vunpack.c.h.bf16 %v57
    %v89 = vunpack.c.l.bf16 %v58
    %v90 = vunpack.c.h.bf16 %v58
    %v91 = vadd.f32 %v59, %v61
    %v92 = vadd.f32 %v91, %v63
    %v93 = vadd.f32 %v92, %v65
    %v94 = vadd.f32 %v93, %v67
    %v95 = vadd.f32 %v94, %v69
    %v96 = vadd.f32 %v95, %v71
    %v97 = vadd.f32 %v96, %v73
    %v98 = vrot.slane %v97, 4
    %v99 = vadd.f32 %v97, %v98
    %v100 = vrot.slane %v99, 2
    %v101 = vadd.f32 %v99, %v100
    %v102 = vrot.slane %v101, 1
    %v103 = vadd.f32 %v101, %v102
    %v104 = vadd.f32 %v60, %v62
    %v105 = vadd.f32 %v104, %v64
    %v106 = vadd.f32 %v105, %v66
    %v107 = vadd.f32 %v106, %v68
    %v108 = vadd.f32 %v107, %v70
    %v109 = vadd.f32 %v108, %v72
    %v110 = vadd.f32 %v109, %v74
    %v111 = vrot.slane %v110, 4
    %v112 = vadd.f32 %v110, %v111
    %v113 = vrot.slane %v112, 2
    %v114 = vadd.f32 %v112, %v113
    %v115 = vrot.slane %v114, 1
    %v116 = vadd.f32 %v114, %v115
    %v117 = vadd.f32 %v75, %v77
    %v118 = vadd.f32 %v117, %v79
    %v119 = vadd.f32 %v118, %v81
    %v120 = vadd.f32 %v119, %v83
    %v121 = vadd.f32 %v120, %v85
    %v122 = vadd.f32 %v121, %v87
    %v123 = vadd.f32 %v122, %v89
    %v124 = vrot.slane %v123, 4
    %v125 = vadd.f32 %v123, %v124
    %v126 = vrot.slane %v125, 2
    %v127 = vadd.f32 %v125, %v126
    %v128 = vrot.slane %v127, 1
    %v129 = vadd.f32 %v127, %v128
    %v130 = vadd.f32 %v76, %v78
    %v131 = vadd.f32 %v130, %v80
    %v132 = vadd.f32 %v131, %v82
    %v133 = vadd.f32 %v132, %v84
    %v134 = vadd.f32 %v133, %v86
    %v135 = vadd.f32 %v134, %v88
    %v136 = vadd.f32 %v135, %v90
    %v137 = vrot.slane %v136, 4
    %v138 = vadd.f32 %v136, %v137
    %v139 = vrot.slane %v138, 2
    %v140 = vadd.f32 %v138, %v139
    %v141 = vrot.slane %v140, 1
    %v142 = vadd.f32 %v140, %v141
    %v143 = vld [vmem:[#allocation5] sm:$0xff]
    %v144 = vld [vmem:[#allocation5 + $0x8] sm:$0xff]
    %v145 = vld [vmem:[#allocation5 + $0x10] sm:$0xff]
    %v146 = vld [vmem:[#allocation5 + $0x18] sm:$0xff]
    %v147 = vld [vmem:[#allocation5 + $0x20] sm:$0xff]
    %v148 = vld [vmem:[#allocation5 + $0x28] sm:$0xff]
    %v149 = vld [vmem:[#allocation5 + $0x30] sm:$0xff]
    %v150 = vld [vmem:[#allocation5 + $0x38] sm:$0xff]
    %v151 = vld [vmem:[#allocation5 + $0x40] sm:$0xff]
    %v152 = vld [vmem:[#allocation5 + $0x48] sm:$0xff]
    %v153 = vld [vmem:[#allocation5 + $0x50] sm:$0xff]
    %v154 = vld [vmem:[#allocation5 + $0x58] sm:$0xff]
    %v155 = vld [vmem:[#allocation5 + $0x60] sm:$0xff]
    %v156 = vld [vmem:[#allocation5 + $0x68] sm:$0xff]
    %v157 = vld [vmem:[#allocation5 + $0x70] sm:$0xff]
    %v158 = vld [vmem:[#allocation5 + $0x78] sm:$0xff]
    %v159 = vld [vmem:[#allocation5 + $0x80] sm:$0xff]
    %v160 = vld [vmem:[#allocation5 + $0x88] sm:$0xff]
    %v161 = vld [vmem:[#allocation5 + $0x90] sm:$0xff]
    %v162 = vld [vmem:[#allocation5 + $0x98] sm:$0xff]
    %v163 = vld [vmem:[#allocation5 + $0xa0] sm:$0xff]
    %v164 = vld [vmem:[#allocation5 + $0xa8] sm:$0xff]
    %v165 = vld [vmem:[#allocation5 + $0xb0] sm:$0xff]
    %v166 = vld [vmem:[#allocation5 + $0xb8] sm:$0xff]
    %v167 = vld [vmem:[#allocation5 + $0xc0] sm:$0xff]
    %v168 = vld [vmem:[#allocation5 + $0xc8] sm:$0xff]
    %v169 = vld [vmem:[#allocation5 + $0xd0] sm:$0xff]
    %v170 = vld [vmem:[#allocation5 + $0xd8] sm:$0xff]
    %v171 = vld [vmem:[#allocation5 + $0xe0] sm:$0xff]
    %v172 = vld [vmem:[#allocation5 + $0xe8] sm:$0xff]
    %v173 = vld [vmem:[#allocation5 + $0xf0] sm:$0xff]
    %v174 = vld [vmem:[#allocation5 + $0xf8] sm:$0xff]
    %v175 = vld [vmem:[%s2] sm:$0x1]
    %v177 = vlaneseq
    %v178 = vshrl.u32 %v177, 7
    %v179 = vsub.s32 0, %v178
    %v180 = vrot.slane %v175, %v179
    %vm186 = vcmask 1041409
    %v187 = vsel %vm186, %v129, %v103
    %v188 = vsel %vm186, %v142, %v116
    %191 = vmatprep.subr.mxu0 0.0
    %192 = vmatpush1.msra.mxu0 %v143
    %193 = vmatprep.subr.mxu0 0.0
    %194 = vmatpush1.msra.mxu0 %v144
    %195 = vmatprep.subr.mxu0 0.0
    %196 = vmatpush1.msra.mxu0 %v145
    %197 = vmatprep.subr.mxu0 0.0
    %198 = vmatpush1.msra.mxu0 %v146
    %199 = vmatprep.subr.mxu0 0.0
    %200 = vmatpush1.msra.mxu0 %v147
    %201 = vmatprep.subr.mxu0 0.0
    %202 = vmatpush1.msra.mxu0 %v148
    %203 = vmatprep.subr.mxu0 0.0
    %204 = vmatpush1.msra.mxu0 %v149
    %205 = vmatprep.subr.mxu0 0.0
    %206 = vmatpush1.msra.mxu0 %v150
    %207 = vmatprep.subr.mxu0 0.0
    %208 = vmatpush1.msra.mxu0 %v151
    %209 = vmatprep.subr.mxu0 0.0
    %210 = vmatpush1.msra.mxu0 %v152
    %211 = vmatprep.subr.mxu0 0.0
    %212 = vmatpush1.msra.mxu0 %v153
    %213 = vmatprep.subr.mxu0 0.0
    %214 = vmatpush1.msra.mxu0 %v154
    %215 = vmatprep.subr.mxu0 0.0
    %216 = vmatpush1.msra.mxu0 %v155
    %217 = vmatprep.subr.mxu0 0.0
    %218 = vmatpush1.msra.mxu0 %v156
    %219 = vmatprep.subr.mxu0 0.0
    %220 = vmatpush1.msra.mxu0 %v157
    %221 = vmatprep.subr.mxu0 0.0
    %222 = vmatpush1.msra.mxu0 %v158
    %223 = vmatprep.subr.mxu0 0.0
    %224 = vmatpush1.msra.mxu0 %v159
    %225 = vmatprep.subr.mxu0 0.0
    %226 = vmatpush1.msra.mxu0 %v160
    %227 = vmatprep.subr.mxu0 0.0
    %228 = vmatpush1.msra.mxu0 %v161
    %229 = vmatprep.subr.mxu0 0.0
    %230 = vmatpush1.msra.mxu0 %v162
    %231 = vmatprep.subr.mxu0 0.0
    %232 = vmatpush1.msra.mxu0 %v163
    %233 = vmatprep.subr.mxu0 0.0
    %234 = vmatpush1.msra.mxu0 %v164
    %235 = vmatprep.subr.mxu0 0.0
    %236 = vmatpush1.msra.mxu0 %v165
    %237 = vmatprep.subr.mxu0 0.0
    %238 = vmatpush1.msra.mxu0 %v166
    %239 = vmatprep.subr.mxu0 0.0
    %240 = vmatpush1.msra.mxu0 %v167
    %241 = vmatprep.subr.mxu0 0.0
    %242 = vmatpush1.msra.mxu0 %v168
    %243 = vmatprep.subr.mxu0 0.0
    %244 = vmatpush1.msra.mxu0 %v169
    %245 = vmatprep.subr.mxu0 0.0
    %246 = vmatpush1.msra.mxu0 %v170
    %247 = vmatprep.subr.mxu0 0.0
    %248 = vmatpush1.msra.mxu0 %v171
    %249 = vmatprep.subr.mxu0 0.0
    %250 = vmatpush1.msra.mxu0 %v172
    %251 = vmatprep.subr.mxu0 0.0
    %252 = vmatpush1.msra.mxu0 %v173
    %253 = vmatprep.subr.mxu0 0.0
    %254 = vmatpush1.msra.mxu0 %v174
    %255 = vmatprep.mubr.f32.mxu0 %v188
    %256 = vmatmul.mubr.f32.gmra.mrb[0].mxu0 %v187
    %v257 = vpop.f32.mrb[0].mxu0
    %v258 = vadd.f32 %v180, %v257
    %v259 = vpop.f32.mrb[0].mxu0
    %260 = vdwg.mxu0
    %vm261 = vcmask 1041408
    %v262 = vsel %vm261, %v258, -inf
    %263 = vmax.xlane.f32.xlu0 %v262
    %v264 = vpop.xlane.xlu0 %263
    %v265 = vsub.f32 %v258, %v264
    %v266 = vmul.f32 %v265, 1.442695
    %v267 = vpow.pop %v266
    %v268 = vsel %vm261, %v267, 0.0
    %269 = vadd.xlane.f32.xlu0 %v268
    %v270 = vpop.xlane.xlu0 %269
    %v271 = vrcp.pop %v270
    %v272 = vmul.f32 %v270, %v271
    %v273 = vsub.f32 2.0, %v272
    %v274 = vmul.f32 %v271, %v273
    %v275 = vmul.f32 %v267, %v274
    %276 = vst [vmem:[#allocation7] sm:$0x3] %v275
    // Predicated region
    $region22: #{tpu_custom_call.1} parent=1 // pred_check
      _
    $region23: #{tpu_custom_call.1} parent=1 // pred_check_branch
      %278 = sbr.rel (0) target = $region25
    $region24: #{tpu_custom_call.1} parent=1 // pred_region
      %s280 = ssub.s32 32, 32
      %281 = vsyncadd [#allocation4], %s280
      %s283 = sshll.u32 [#allocation7], 4
      %s284 = int_to_ptr.vmem [resolvable:$true] %s283
      %286 = dma.vmem_to_hbm [thread:$0]  %s284, 32, %s3, [#allocation4]
    $region25: #{tpu_custom_call.1} parent=1 // pred_fallthru
      _
    // Predicated region
    $region26: #{tpu_custom_call.1} parent=1 // pred_check
      _
    $region27: #{tpu_custom_call.1} parent=1 // pred_check_branch
      %288 = sbr.rel (0) target = $region29
    $region28: #{tpu_custom_call.1} parent=1 // pred_region
      %289 = dma.done [#allocation4], 32
    $region29: #{tpu_custom_call.1} parent=1 // pred_fallthru
      _
    %290 = vsyncpa [#allocation3], 1
    %291 = vsyncpa [#allocation6], 1
    %292 = vsyncpa [#allocation4], 1

</llo_original>
